<compile_context>
chip_gen: v5e
topology: v5e:2x2
jax: 0.10.0
libtpu: 0.0.40
codegen_flags: <defaults>
</compile_context>

<pallas_src>
import jax
import jax.numpy as jnp
from jax import lax
from jax.experimental import pallas as pl
from jax.experimental.pallas import tpu as pltpu


def _critic_kernel(x_ref, w1_ref, b1_ref, w2_ref, b2_ref, w3_ref, b3_ref, o_ref):
    act_dt = b1_ref.dtype  # activation dtype: f32 (v5e) or bf16 (v6e/v7x)

    # fc1: (64, obs) @ (obs, TB) -> (64, TB) on the MXU, f32 accumulate.
    h1 = jnp.dot(w1_ref[...], x_ref[...], preferred_element_type=jnp.float32)
    h1 = jnp.tanh(h1.astype(act_dt) + b1_ref[...])          # (64, TB)

    # fc2: (64, 64) @ (64, TB) -> (64, TB) on the MXU, f32 accumulate.
    h2 = jnp.dot(w2_ref[...], h1.astype(w2_ref.dtype),
                 preferred_element_type=jnp.float32)
    h2 = jnp.tanh(h2.astype(act_dt) + b2_ref[...])          # (64, TB)

    # fc3 head (64 -> 1) on the MXU: (1, 64) @ (64, TB) -> lane-dense (1, TB).
    o_ref[...] = jnp.dot(w3_ref[...], h2.astype(w3_ref.dtype),
                         preferred_element_type=jnp.float32) + b3_ref[...]


def _round_up(n, m):
    return ((n + m - 1) // m) * m


def _bf16_vpu_supported():
    """bf16 VPU/EUP exists on v6e / v7x; v5e and older should stay f32."""
    kind = jax.devices()[0].device_kind.lower()
    return ("v6" in kind) or ("v7" in kind) or ("7x" in kind)


def critic_forward(x, params, *, compute_dtype=None, activation_dtype=None,
                   tb_rows=8192):
    """x: (B, obs_dim) float32. Returns (B,) float32 (0-d scalar if B == 1)."""
    w1, b1, w2, b2, w3, b3 = params
    B, obs_dim = x.shape
    hidden = w1.shape[0]

    if compute_dtype is None or activation_dtype is None:
        bf16_ok = _bf16_vpu_supported()
        if compute_dtype is None:
            compute_dtype = jnp.bfloat16 if bf16_ok else jnp.float32
        if activation_dtype is None:
            activation_dtype = jnp.bfloat16 if bf16_ok else jnp.float32

    assert tb_rows % 128 == 0, "batch tile must be a multiple of 128 lanes"
    tb = min(tb_rows, _round_up(B, 128))          # batch rows per grid step
    # v7x megacore: if the batch would be one tile but is big enough, split it
    # in two so the "parallel" axis shards across both TensorCores.  Costs a
    # single extra (cheap) grid step on 1-TC chips.
    if B >= 256 and _round_up(B, tb) // tb < 2:
        tb = _round_up(pl.cdiv(B, 2), 128)
    num_tiles = pl.cdiv(B, tb)
    b_pad = num_tiles * tb

    # Pre-transposed, lane-dense x: (obs_dim, B_pad).  Padding the ragged tail
    # keeps every input block and output store full / unmasked.
    x_t = x.astype(compute_dtype).T
    if b_pad != B:
        x_t = jnp.pad(x_t, ((0, 0), (0, b_pad - B)))

    w1_c = w1.astype(compute_dtype)                # (64, obs)
    w2_c = w2.astype(compute_dtype)                # (64, 64)
    w3_c = w3.astype(compute_dtype)                # (1, 64)
    b1_c = b1.reshape(hidden, 1).astype(activation_dtype)
    b2_c = b2.reshape(hidden, 1).astype(activation_dtype)
    b3_c = b3.reshape(1, 1).astype(jnp.float32)

    # Weights/biases: constant index_map -> VMEM-resident across grid steps.
    const = lambda shape: pl.BlockSpec(shape, lambda i: (0, 0))

    out2d = pl.pallas_call(
        _critic_kernel,
        out_shape=jax.ShapeDtypeStruct((1, b_pad), jnp.float32),
        grid=(num_tiles,),
        in_specs=[
            pl.BlockSpec((obs_dim, tb), lambda i: (0, i)),   # x^T column tile
            const((hidden, obs_dim)),                        # w1  (64, obs)
            const((hidden, 1)),                              # b1  (64, 1)
            const((hidden, hidden)),                         # w2  (64, 64)
            const((hidden, 1)),                              # b2  (64, 1)
            const((1, hidden)),                              # w3  (1, 64)
            const((1, 1)),                                   # b3  (1, 1)
        ],
        out_specs=pl.BlockSpec((1, tb), lambda i: (0, i)),   # lane-dense slab
        compiler_params=pltpu.CompilerParams(
            dimension_semantics=("parallel",),               # v7x: 2-TC shard
            vmem_limit_bytes=32 * 1024 * 1024),              # headroom, <= phys everywhere
    )(x_t, w1_c, b1_c, w2_c, b2_c, w3_c, b3_c)

    # torch .squeeze(): (B,) for B > 1, scalar for B == 1.
    return jnp.squeeze(out2d[0, :B])


def init_critic_params(key, obs_dim, hidden=64):
    """PyTorch nn.Linear layout: weights (out, in), biases (out,)."""
    k1, k2, k3 = jax.random.split(key, 3)

    def linear(k, fan_in, fan_out):
        bound = 1.0 / jnp.sqrt(jnp.float32(fan_in))
        kw, kb = jax.random.split(k)
        w = jax.random.uniform(kw, (fan_out, fan_in), jnp.float32, -bound, bound)
        b = jax.random.uniform(kb, (fan_out,), jnp.float32, -bound, bound)
        return w, b

    w1, b1 = linear(k1, obs_dim, hidden)
    w2, b2 = linear(k2, hidden, hidden)
    w3, b3 = linear(k3, hidden, 1)
    return (w1, b1, w2, b2, w3, b3)


def critic_reference(x, params):
    """Plain-JAX reference (f32, highest-precision dots)."""
    w1, b1, w2, b2, w3, b3 = params
    hi = lax.Precision.HIGHEST
    h = jnp.tanh(jnp.dot(x, w1.T, precision=hi) + b1)
    h = jnp.tanh(jnp.dot(h, w2.T, precision=hi) + b2)
    return jnp.squeeze(jnp.dot(h, w3.T, precision=hi) + b3)


if __name__ == "__main__":
    key = jax.random.PRNGKey(0)
    k_param, k_x1, k_x2 = jax.random.split(key, 3)

    obs_dim = 16
    params = init_critic_params(k_param, obs_dim)

    # Small batch, forced f32 everywhere (single tile, tight tolerance).
    x_small = jax.random.normal(k_x1, (8, obs_dim), jnp.float32)
    out_small = jax.block_until_ready(
        critic_forward(x_small, params,
                       compute_dtype=jnp.float32, activation_dtype=jnp.float32))
    ref_small = critic_reference(x_small, params)
    assert out_small.shape == (8,), out_small.shape
    assert jnp.allclose(out_small, ref_small, atol=1e-4, rtol=1e-4)

    # Ragged batch, forced f32, small tile -> multi-tile grid + tail padding.
    x_big = jax.random.normal(k_x2, (300, obs_dim), jnp.float32)
    out_big = jax.block_until_ready(
        critic_forward(x_big, params, tb_rows=128,
                       compute_dtype=jnp.float32, activation_dtype=jnp.float32))
    ref_big = critic_reference(x_big, params)
    assert out_big.shape == (300,), out_big.shape
    assert jnp.allclose(out_big, ref_big, atol=1e-4, rtol=1e-4)

    # Default (auto-dtype, default tile) path: exercises the 2-tile megacore
    # split (tb=256, 2 steps) and bf16 activations on v6e/v7x (f32 on v5e).
    out_auto = jax.block_until_ready(critic_forward(x_big, params))
    assert out_auto.shape == (300,), out_auto.shape
    assert bool(jnp.all(jnp.isfinite(out_auto)))
    assert jnp.allclose(out_auto, ref_big, atol=1e-1, rtol=1e-1)

    print("KERNEL_OK")
</pallas_src>

<mosaic_0001>
module attributes {stable_mosaic.version = 11 : i64} {
  func.func @_critic_kernel(%arg0: i32, %arg1: memref<16x128xf32, #tpu.memory_space<vmem>>, %arg2: memref<64x16xf32, #tpu.memory_space<vmem>>, %arg3: memref<64x1xf32, #tpu.memory_space<vmem>>, %arg4: memref<64x64xf32, #tpu.memory_space<vmem>>, %arg5: memref<64x1xf32, #tpu.memory_space<vmem>>, %arg6: memref<1x64xf32, #tpu.memory_space<vmem>>, %arg7: memref<1x1xf32, #tpu.memory_space<vmem>>, %arg8: memref<1x128xf32, #tpu.memory_space<vmem>>) attributes {dimension_semantics = [#tpu.dimension_semantics<parallel>], iteration_bounds = array<i64: 1>, scalar_prefetch = 0 : i64, scratch_operands = 0 : i64, tpu.core_type = #tpu.core_type<tc>, window_params = [{transform_indices = @transform_0, window_bounds = array<i64: 16, 128>}, {pipeline_mode = #tpu.pipeline_mode<synchronous>, transform_indices = @transform_1, window_bounds = array<i64: 64, 16>}, {pipeline_mode = #tpu.pipeline_mode<synchronous>, transform_indices = @transform_2, window_bounds = array<i64: 64, 1>}, {pipeline_mode = #tpu.pipeline_mode<synchronous>, transform_indices = @transform_3, window_bounds = array<i64: 64, 64>}, {pipeline_mode = #tpu.pipeline_mode<synchronous>, transform_indices = @transform_4, window_bounds = array<i64: 64, 1>}, {pipeline_mode = #tpu.pipeline_mode<synchronous>, transform_indices = @transform_5, window_bounds = array<i64: 1, 64>}, {pipeline_mode = #tpu.pipeline_mode<synchronous>, transform_indices = @transform_6, window_bounds = array<i64: 1, 1>}, {transform_indices = @transform_7, window_bounds = array<i64: 1, 128>}]} {
    %c0 = arith.constant 0 : index
    %c0_0 = arith.constant 0 : index
    %0 = vector.load %arg2[%c0, %c0_0] : memref<64x16xf32, #tpu.memory_space<vmem>>, vector<64x16xf32>
    %c0_1 = arith.constant 0 : index
    %c0_2 = arith.constant 0 : index
    %1 = vector.load %arg1[%c0_1, %c0_2] : memref<16x128xf32, #tpu.memory_space<vmem>>, vector<16x128xf32>
    %cst = arith.constant dense<0.000000e+00> : vector<64x128xf32>
    %2 = tpu.matmul %0, %1, %cst {dimension_numbers = #tpu.dot_dimension_numbers<[1], [0], [0], [1], [0, 0, 1, 1], [], []>} : vector<64x16xf32>, vector<16x128xf32>, vector<64x128xf32> -> vector<64x128xf32>
    %c0_3 = arith.constant 0 : index
    %c0_4 = arith.constant 0 : index
    %3 = vector.load %arg3[%c0_3, %c0_4] : memref<64x1xf32, #tpu.memory_space<vmem>>, vector<64x1xf32>
    %4 = vector.broadcast %3 : vector<64x1xf32> to vector<64x128xf32>
    %5 = arith.addf %2, %4 : vector<64x128xf32>
    %6 = math.tanh %5 : vector<64x128xf32>
    %c0_5 = arith.constant 0 : index
    %c0_6 = arith.constant 0 : index
    %7 = vector.load %arg4[%c0_5, %c0_6] : memref<64x64xf32, #tpu.memory_space<vmem>>, vector<64x64xf32>
    %cst_7 = arith.constant dense<0.000000e+00> : vector<64x128xf32>
    %8 = tpu.matmul %7, %6, %cst_7 {dimension_numbers = #tpu.dot_dimension_numbers<[1], [0], [0], [1], [0, 0, 1, 1], [], []>} : vector<64x64xf32>, vector<64x128xf32>, vector<64x128xf32> -> vector<64x128xf32>
    %c0_8 = arith.constant 0 : index
    %c0_9 = arith.constant 0 : index
    %9 = vector.load %arg5[%c0_8, %c0_9] : memref<64x1xf32, #tpu.memory_space<vmem>>, vector<64x1xf32>
    %10 = vector.broadcast %9 : vector<64x1xf32> to vector<64x128xf32>
    %11 = arith.addf %8, %10 : vector<64x128xf32>
    %12 = math.tanh %11 : vector<64x128xf32>
    %c0_10 = arith.constant 0 : index
    %c0_11 = arith.constant 0 : index
    %13 = vector.load %arg6[%c0_10, %c0_11] : memref<1x64xf32, #tpu.memory_space<vmem>>, vector<1x64xf32>
    %cst_12 = arith.constant dense<0.000000e+00> : vector<1x128xf32>
    %14 = tpu.matmul %13, %12, %cst_12 {dimension_numbers = #tpu.dot_dimension_numbers<[1], [0], [0], [1], [0, 0, 1, 1], [], []>} : vector<1x64xf32>, vector<64x128xf32>, vector<1x128xf32> -> vector<1x128xf32>
    %c0_13 = arith.constant 0 : index
    %c0_14 = arith.constant 0 : index
    %15 = vector.load %arg7[%c0_13, %c0_14] : memref<1x1xf32, #tpu.memory_space<vmem>>, vector<1x1xf32>
    %16 = vector.broadcast %15 : vector<1x1xf32> to vector<1x128xf32>
    %17 = arith.addf %14, %16 : vector<1x128xf32>
    %c0_15 = arith.constant 0 : index
    %c0_16 = arith.constant 0 : index
    %18 = vector.load %arg8[%c0_15, %c0_16] : memref<1x128xf32, #tpu.memory_space<vmem>>, vector<1x128xf32>
    tpu.vector_store %arg8[%c0_15, %c0_16], %17 {strides = array<i32>} : memref<1x128xf32, #tpu.memory_space<vmem>>, vector<1x128xf32>,
    return
  }
  func.func @transform_0(%arg0: i32) -> (i32, i32) {
    %c0_i32 = arith.constant 0 : i32
    %c0_i32_0 = arith.constant 0 : i32
    return %c0_i32, %arg0 : i32, i32
  }
  func.func @transform_1(%arg0: i32) -> (i32, i32) {
    %c0_i32 = arith.constant 0 : i32
    %c0_i32_0 = arith.constant 0 : i32
    %c0_i32_1 = arith.constant 0 : i32
    return %c0_i32, %c0_i32_0 : i32, i32
  }
  func.func @transform_2(%arg0: i32) -> (i32, i32) {
    %c0_i32 = arith.constant 0 : i32
    %c0_i32_0 = arith.constant 0 : i32
    %c0_i32_1 = arith.constant 0 : i32
    return %c0_i32, %c0_i32_0 : i32, i32
  }
  func.func @transform_3(%arg0: i32) -> (i32, i32) {
    %c0_i32 = arith.constant 0 : i32
    %c0_i32_0 = arith.constant 0 : i32
    %c0_i32_1 = arith.constant 0 : i32
    return %c0_i32, %c0_i32_0 : i32, i32
  }
  func.func @transform_4(%arg0: i32) -> (i32, i32) {
    %c0_i32 = arith.constant 0 : i32
    %c0_i32_0 = arith.constant 0 : i32
    %c0_i32_1 = arith.constant 0 : i32
    return %c0_i32, %c0_i32_0 : i32, i32
  }
  func.func @transform_5(%arg0: i32) -> (i32, i32) {
    %c0_i32 = arith.constant 0 : i32
    %c0_i32_0 = arith.constant 0 : i32
    %c0_i32_1 = arith.constant 0 : i32
    return %c0_i32, %c0_i32_0 : i32, i32
  }
  func.func @transform_6(%arg0: i32) -> (i32, i32) {
    %c0_i32 = arith.constant 0 : i32
    %c0_i32_0 = arith.constant 0 : i32
    %c0_i32_1 = arith.constant 0 : i32
    return %c0_i32, %c0_i32_0 : i32, i32
  }
  func.func @transform_7(%arg0: i32) -> (i32, i32) {
    %c0_i32 = arith.constant 0 : i32
    %c0_i32_0 = arith.constant 0 : i32
    return %c0_i32, %arg0 : i32, i32
  }
}

</mosaic_0001>

<llo_original>
// kernel: tpu_custom_call.1
$region0: #{tpu_custom_call.1}
  #allocation0 [shape = 'u32[]', space=smem, size = 0x4, offset = 0x4, fixed_abs, tag = 'smem constant byte address 0x4 - core index']
  #allocation1 [shape = 'u32[72,128]{1,0:T(1,128)}', space=vmem, size = 0x9000, scoped, tag = 'internal scratch']
  #allocation2 [shape = 'f32[1,1]{1,0:T(1,128)S(1)}', space=vmem, size = 0x200, scoped, tag = 'scoped memory for tpu_custom_call.1']
  %s0 = inlined_call_operand.vmem [shape: f32[16,128], index: 0, kind: input, shape index: {}]
  %s1 = inlined_call_operand.vmem [shape: f32[64,16], index: 1, kind: input, shape index: {}]
  %s2 = inlined_call_operand.vmem [shape: f32[64,1], index: 2, kind: input, shape index: {}]
  %s3 = inlined_call_operand.vmem [shape: f32[64,64], index: 3, kind: input, shape index: {}]
  %s4 = inlined_call_operand.vmem [shape: f32[64,1], index: 4, kind: input, shape index: {}]
  %s5 = inlined_call_operand.vmem [shape: f32[1,64], index: 5, kind: input, shape index: {}]
  %s6 = inlined_call_operand.<no memory space> [shape: f32[1,1], index: 6, kind: input, shape index: {}]
  %s7 = inlined_call_operand.hbm [shape: f32[1,128], index: 7, kind: output, shape index: {}]
  %s8 = sld [smem:[#allocation0]]
  $region38: #{tpu_custom_call.1} parent=0
    _
  %s10 = ssub.s32 1, %s8
  %s11 = scalar_select 0, %s10, %s8
  %v12 = vstv %s6
  %13 = vst [vmem:[#allocation2] sm:$0x1] %v12
  $region1: #{tpu_custom_call.1} parent=0
    #allocation3 [shape = 'u8[512]{0}', space=vmem, size = 0x400, scoped, tag = 'output window, operand 0, single buffered']
    #allocation4 [shape = 's32[1]{0}', space=sflag, size = 0x4, scoped, tag = 'scoped memory for tpu_custom_call.1']
    %14 = vsyncpa [#allocation4], 0
    // Predicated region
    $region2: #{tpu_custom_call.1} parent=1 // pred_check
      _
    $region3: #{tpu_custom_call.1} parent=1 // pred_check_branch
      %16 = sbr.rel (0) target = $region5
    $region4: #{tpu_custom_call.1} parent=1 // pred_region
      _
    $region5: #{tpu_custom_call.1} parent=1 // pred_fallthru
      _
    // Predicated region
    $region6: #{tpu_custom_call.1} parent=1 // pred_check
      _
    $region7: #{tpu_custom_call.1} parent=1 // pred_check_branch
      %18 = sbr.rel (0) target = $region9
    $region8: #{tpu_custom_call.1} parent=1 // pred_region
      _
    $region9: #{tpu_custom_call.1} parent=1 // pred_fallthru
      _
    // Predicated region
    $region10: #{tpu_custom_call.1} parent=1 // pred_check
      _
    $region11: #{tpu_custom_call.1} parent=1 // pred_check_branch
      %20 = sbr.rel (0) target = $region13
    $region12: #{tpu_custom_call.1} parent=1 // pred_region
      _
    $region13: #{tpu_custom_call.1} parent=1 // pred_fallthru
      _
    // Predicated region
    $region14: #{tpu_custom_call.1} parent=1 // pred_check
      _
    $region15: #{tpu_custom_call.1} parent=1 // pred_check_branch
      %22 = sbr.rel (0) target = $region17
    $region16: #{tpu_custom_call.1} parent=1 // pred_region
      _
    $region17: #{tpu_custom_call.1} parent=1 // pred_fallthru
      _
    // Predicated region
    $region18: #{tpu_custom_call.1} parent=1 // pred_check
      _
    $region19: #{tpu_custom_call.1} parent=1 // pred_check_branch
      %24 = sbr.rel (0) target = $region21
    $region20: #{tpu_custom_call.1} parent=1 // pred_region
      _
    $region21: #{tpu_custom_call.1} parent=1 // pred_fallthru
      _
    // Predicated region
    $region22: #{tpu_custom_call.1} parent=1 // pred_check
      _
    $region23: #{tpu_custom_call.1} parent=1 // pred_check_branch
      %26 = sbr.rel (0) target = $region25
    $region24: #{tpu_custom_call.1} parent=1 // pred_region
      _
    $region25: #{tpu_custom_call.1} parent=1 // pred_fallthru
      _
    // Predicated region
    $region26: #{tpu_custom_call.1} parent=1 // pred_check
      _
    $region27: #{tpu_custom_call.1} parent=1 // pred_check_branch
      %28 = sbr.rel (0) target = $region29
    $region28: #{tpu_custom_call.1} parent=1 // pred_region
      _
    $region29: #{tpu_custom_call.1} parent=1 // pred_fallthru
      _
    %v29 = vld [vmem:[%s1] sm:$0xff]
    %v30 = vld [vmem:[%s1 + $0x8] sm:$0xff]
    %v31 = vld [vmem:[%s1 + $0x10] sm:$0xff]
    %v32 = vld [vmem:[%s1 + $0x18] sm:$0xff]
    %v33 = vld [vmem:[%s1 + $0x20] sm:$0xff]
    %v34 = vld [vmem:[%s1 + $0x28] sm:$0xff]
    %v35 = vld [vmem:[%s1 + $0x30] sm:$0xff]
    %v36 = vld [vmem:[%s1 + $0x38] sm:$0xff]
    %v37 = vld [vmem:[%s0] sm:$0xff]
    %v38 = vld [vmem:[%s0 + $0x8] sm:$0xff]
    %v39 = vld [vmem:[%s2] sm:$0xff]
    %v40 = vld [vmem:[%s2 + $0x8] sm:$0xff]
    %v41 = vld [vmem:[%s2 + $0x10] sm:$0xff]
    %v42 = vld [vmem:[%s2 + $0x18] sm:$0xff]
    %v43 = vld [vmem:[%s2 + $0x20] sm:$0xff]
    %v44 = vld [vmem:[%s2 + $0x28] sm:$0xff]
    %v45 = vld [vmem:[%s2 + $0x30] sm:$0xff]
    %v46 = vld [vmem:[%s2 + $0x38] sm:$0xff]
    %48 = vset.pattern.permute.xlu0 0
    %49 = vperm.xlu0 %48, %v39
    %v50 = vpop.permute.xlu0 %49
    %53 = vset.pattern.permute.xlu0 0
    %54 = vperm.xlu0 %53, %v40
    %v55 = vpop.permute.xlu0 %54
    %58 = vset.pattern.permute.xlu0 0
    %59 = vperm.xlu0 %58, %v41
    %v60 = vpop.permute.xlu0 %59
    %63 = vset.pattern.permute.xlu0 0
    %64 = vperm.xlu0 %63, %v42
    %v65 = vpop.permute.xlu0 %64
    %68 = vset.pattern.permute.xlu0 0
    %69 = vperm.xlu0 %68, %v43
    %v70 = vpop.permute.xlu0 %69
    %73 = vset.pattern.permute.xlu0 0
    %74 = vperm.xlu0 %73, %v44
    %v75 = vpop.permute.xlu0 %74
    %78 = vset.pattern.permute.xlu0 0
    %79 = vperm.xlu0 %78, %v45
    %v80 = vpop.permute.xlu0 %79
    %83 = vset.pattern.permute.xlu0 0
    %84 = vperm.xlu0 %83, %v46
    %v85 = vpop.permute.xlu0 %84
    %vm87 = vcmask 130048
    %v89 = vsel %vm87, %v29, 0
    %v92 = vsel %vm87, %v30, 0
    %v95 = vsel %vm87, %v31, 0
    %v98 = vsel %vm87, %v32, 0
    %v101 = vsel %vm87, %v33, 0
    %v104 = vsel %vm87, %v34, 0
    %v107 = vsel %vm87, %v35, 0
    %v110 = vsel %vm87, %v36, 0
    %112 = vmatpush.msra.mxu0 0.0
    %113 = vmatpush.msra.mxu0 0.0
    %114 = vmatpush.msra.mxu0 0.0
    %115 = vmatpush.msra.mxu0 0.0
    %116 = vmatpush.msra.mxu0 0.0
    %117 = vmatpush.msra.mxu0 0.0
    %118 = vmatpush.msra.mxu0 0.0
    %119 = vmatpush.msra.mxu0 0.0
    %120 = vmatpush.msra.mxu0 0.0
    %121 = vmatpush.msra.mxu0 0.0
    %122 = vmatpush.msra.mxu0 0.0
    %123 = vmatpush.msra.mxu0 0.0
    %124 = vmatpush.msra.mxu0 0.0
    %125 = vmatpush.msra.mxu0 0.0
    %126 = vmatpush.msra.mxu0 %v38
    %127 = vmatpush.msra.mxu0 %v37
    %128 = vmatmul.f32.gmra.mxu0 %v89
    %v129 = vpop.f32.mrf.mxu0
    %v130 = vadd.f32 %v50, %v129
    %131 = vmatmul.f32.gmra.mxu0 %v92
    %v132 = vpop.f32.mrf.mxu0
    %v133 = vadd.f32 %v55, %v132
    %134 = vmatmul.f32.gmra.mxu0 %v95
    %v135 = vpop.f32.mrf.mxu0
    %v136 = vadd.f32 %v60, %v135
    %137 = vmatmul.f32.gmra.mxu0 %v98
    %v138 = vpop.f32.mrf.mxu0
    %v139 = vadd.f32 %v65, %v138
    %140 = vmatmul.f32.gmra.mxu0 %v101
    %v141 = vpop.f32.mrf.mxu0
    %v142 = vadd.f32 %v70, %v141
    %143 = vmatmul.f32.gmra.mxu0 %v104
    %v144 = vpop.f32.mrf.mxu0
    %v145 = vadd.f32 %v75, %v144
    %146 = vmatmul.f32.gmra.mxu0 %v107
    %v147 = vpop.f32.mrf.mxu0
    %v148 = vadd.f32 %v80, %v147
    %149 = vmatmul.f32.gmra.mxu0 %v110
    %v150 = vpop.f32.mrf.mxu0
    %v151 = vadd.f32 %v85, %v150
    %152 = vdwg.mxu0
    %v153 = vtanh.pop %v130
    %v154 = vtanh.pop %v133
    %v155 = vtanh.pop %v136
    %v156 = vtanh.pop %v139
    %v157 = vtanh.pop %v142
    %v158 = vtanh.pop %v145
    %v159 = vtanh.pop %v148
    %v160 = vtanh.pop %v151
    %v161 = vld [vmem:[%s3] sm:$0xff]
    %v162 = vld [vmem:[%s3 + $0x8] sm:$0xff]
    %v163 = vld [vmem:[%s3 + $0x10] sm:$0xff]
    %v164 = vld [vmem:[%s3 + $0x18] sm:$0xff]
    %v165 = vld [vmem:[%s3 + $0x20] sm:$0xff]
    %v166 = vld [vmem:[%s3 + $0x28] sm:$0xff]
    %v167 = vld [vmem:[%s3 + $0x30] sm:$0xff]
    %v168 = vld [vmem:[%s3 + $0x38] sm:$0xff]
    %v169 = vld [vmem:[%s4] sm:$0xff]
    %v170 = vld [vmem:[%s4 + $0x8] sm:$0xff]
    %v171 = vld [vmem:[%s4 + $0x10] sm:$0xff]
    %v172 = vld [vmem:[%s4 + $0x18] sm:$0xff]
    %v173 = vld [vmem:[%s4 + $0x20] sm:$0xff]
    %v174 = vld [vmem:[%s4 + $0x28] sm:$0xff]
    %v175 = vld [vmem:[%s4 + $0x30] sm:$0xff]
    %v176 = vld [vmem:[%s4 + $0x38] sm:$0xff]
    %178 = vset.pattern.permute.xlu0 0
    %179 = vperm.xlu0 %178, %v169
    %v180 = vpop.permute.xlu0 %179
    %183 = vset.pattern.permute.xlu0 0
    %184 = vperm.xlu0 %183, %v170
    %v185 = vpop.permute.xlu0 %184
    %188 = vset.pattern.permute.xlu0 0
    %189 = vperm.xlu0 %188, %v171
    %v190 = vpop.permute.xlu0 %189
    %193 = vset.pattern.permute.xlu0 0
    %194 = vperm.xlu0 %193, %v172
    %v195 = vpop.permute.xlu0 %194
    %198 = vset.pattern.permute.xlu0 0
    %199 = vperm.xlu0 %198, %v173
    %v200 = vpop.permute.xlu0 %199
    %203 = vset.pattern.permute.xlu0 0
    %204 = vperm.xlu0 %203, %v174
    %v205 = vpop.permute.xlu0 %204
    %208 = vset.pattern.permute.xlu0 0
    %209 = vperm.xlu0 %208, %v175
    %v210 = vpop.permute.xlu0 %209
    %213 = vset.pattern.permute.xlu0 0
    %214 = vperm.xlu0 %213, %v176
    %v215 = vpop.permute.xlu0 %214
    %vm217 = vcmask 523264
    %v219 = vsel %vm217, %v161, 0
    %v222 = vsel %vm217, %v162, 0
    %v225 = vsel %vm217, %v163, 0
    %v228 = vsel %vm217, %v164, 0
    %v231 = vsel %vm217, %v165, 0
    %v234 = vsel %vm217, %v166, 0
    %v237 = vsel %vm217, %v167, 0
    %v240 = vsel %vm217, %v168, 0
    %242 = vmatpush.msra.mxu0 0.0
    %243 = vmatpush.msra.mxu0 0.0
    %244 = vmatpush.msra.mxu0 0.0
    %245 = vmatpush.msra.mxu0 0.0
    %246 = vmatpush.msra.mxu0 0.0
    %247 = vmatpush.msra.mxu0 0.0
    %248 = vmatpush.msra.mxu0 0.0
    %249 = vmatpush.msra.mxu0 0.0
    %250 = vmatpush.msra.mxu0 %v160
    %251 = vmatpush.msra.mxu0 %v159
    %252 = vmatpush.msra.mxu0 %v158
    %253 = vmatpush.msra.mxu0 %v157
    %254 = vmatpush.msra.mxu0 %v156
    %255 = vmatpush.msra.mxu0 %v155
    %256 = vmatpush.msra.mxu0 %v154
    %257 = vmatpush.msra.mxu0 %v153
    %258 = vmatmul.f32.gmra.mxu0 %v219
    %v259 = vpop.f32.mrf.mxu0
    %v260 = vadd.f32 %v180, %v259
    %261 = vmatmul.f32.gmra.mxu0 %v222
    %v262 = vpop.f32.mrf.mxu0
    %v263 = vadd.f32 %v185, %v262
    %264 = vmatmul.f32.gmra.mxu0 %v225
    %v265 = vpop.f32.mrf.mxu0
    %v266 = vadd.f32 %v190, %v265
    %267 = vmatmul.f32.gmra.mxu0 %v228
    %v268 = vpop.f32.mrf.mxu0
    %v269 = vadd.f32 %v195, %v268
    %270 = vmatmul.f32.gmra.mxu0 %v231
    %v271 = vpop.f32.mrf.mxu0
    %v272 = vadd.f32 %v200, %v271
    %273 = vmatmul.f32.gmra.mxu0 %v234
    %v274 = vpop.f32.mrf.mxu0
    %v275 = vadd.f32 %v205, %v274
    %276 = vmatmul.f32.gmra.mxu0 %v237
    %v277 = vpop.f32.mrf.mxu0
    %v278 = vadd.f32 %v210, %v277
    %279 = vmatmul.f32.gmra.mxu0 %v240
    %v280 = vpop.f32.mrf.mxu0
    %v281 = vadd.f32 %v215, %v280
    %282 = vdwg.mxu0
    %v283 = vtanh.pop %v260
    %v284 = vtanh.pop %v263
    %v285 = vtanh.pop %v266
    %v286 = vtanh.pop %v269
    %v287 = vtanh.pop %v272
    %v288 = vtanh.pop %v275
    %v289 = vtanh.pop %v278
    %v290 = vtanh.pop %v281
    %v291 = vld [vmem:[%s5] sm:$0x1]
    %v292 = vld [vmem:[#allocation2] sm:$0x1]
    %294 = vset.pattern.permute.xlu0 0
    %295 = vperm.xlu0 %294, %v292
    %v296 = vpop.permute.xlu0 %295
    %v298 = vperm.slane %v296, 0
    %v300 = vsel %vm217, %v291, 0
    %302 = vmatpush.msra.mxu0 0.0
    %303 = vmatpush.msra.mxu0 0.0
    %304 = vmatpush.msra.mxu0 0.0
    %305 = vmatpush.msra.mxu0 0.0
    %306 = vmatpush.msra.mxu0 0.0
    %307 = vmatpush.msra.mxu0 0.0
    %308 = vmatpush.msra.mxu0 0.0
    %309 = vmatpush.msra.mxu0 0.0
    %310 = vmatpush.msra.mxu0 %v290
    %311 = vmatpush.msra.mxu0 %v289
    %312 = vmatpush.msra.mxu0 %v288
    %313 = vmatpush.msra.mxu0 %v287
    %314 = vmatpush.msra.mxu0 %v286
    %315 = vmatpush.msra.mxu0 %v285
    %316 = vmatpush.msra.mxu0 %v284
    %317 = vmatpush.msra.mxu0 %v283
    %318 = vmatmul.f32.gmra.mxu0 %v300
    %v319 = vpop.f32.mrf.mxu0
    %v320 = vadd.f32 %v298, %v319
    %321 = vdwg.mxu0
    %322 = vst [vmem:[#allocation3] sm:$0x1] %v320
    // Predicated region
    $region30: #{tpu_custom_call.1} parent=1 // pred_check
      _
    $region31: #{tpu_custom_call.1} parent=1 // pred_check_branch
      %324 = sbr.rel (0) target = $region33
    $region32: #{tpu_custom_call.1} parent=1 // pred_region
      %326 = vsyncadd [#allocation4], 0
      %s328 = sshll.u32 [#allocation3], 4
      %s329 = int_to_ptr.vmem [resolvable:$true] %s328
      %s330 = sshll.u32 %s7, 4
      %s331 = int_to_ptr.hbm [resolvable:$true] %s330
      %333 = dma.vmem_to_hbm [thread:$0]  %s329, 16, %s331, [#allocation4]
    $region33: #{tpu_custom_call.1} parent=1 // pred_fallthru
      _
    // Predicated region
    $region34: #{tpu_custom_call.1} parent=1 // pred_check
      _
    $region35: #{tpu_custom_call.1} parent=1 // pred_check_branch
      %335 = sbr.rel (0) target = $region37
    $region36: #{tpu_custom_call.1} parent=1 // pred_region
      %337 = dma.done [#allocation4], 16
    $region37: #{tpu_custom_call.1} parent=1 // pred_fallthru
      _
    %338 = vsyncpa [#allocation4], 1

</llo_original>
